<compile_context>
chip_gen: v7x
topology: tpu7x:2x2x1
jax: 0.10.0
libtpu: 0.0.40
codegen_flags: <defaults>
</compile_context>

<pallas_src>
import math

import jax
import jax.numpy as jnp
from jax.experimental import pallas as pl
from jax.experimental.pallas import tpu as pltpu

_SUBLANE = 8


# ----------------------------- kernels ------------------------------------


def _affine_kernel(x_ref, w_ref, b_ref, o_ref):
    """o = x @ W + b  (single MXU pass, f32 accumulation)."""
    h = jnp.dot(x_ref[...], w_ref[...], preferred_element_type=jnp.float32)
    o_ref[...] = (h + b_ref[...]).astype(o_ref.dtype)


def _make_chain_kernel(n_layers):
    """Layer-by-layer chain kernel (matches PyTorch loop rounding exactly).

    refs = (x_ref, w0_ref, b0_ref, w1_ref, b1_ref, ..., o_ref)
    """

    def kernel(*refs):
        x_ref = refs[0]
        o_ref = refs[-1]
        h = x_ref[...]
        for layer in range(n_layers):
            w_ref = refs[1 + 2 * layer]
            b_ref = refs[2 + 2 * layer]
            h = jnp.dot(h, w_ref[...], preferred_element_type=jnp.float32)
            h = h + b_ref[...]
        o_ref[...] = h.astype(o_ref.dtype)

    return kernel


# ----------------------------- helpers -------------------------------------


def _collapse_affine(params):
    """Fold a stack of affine layers into a single (W_total, b_total)."""
    w_tot, b_tot = params[0]
    w_tot = w_tot.astype(jnp.float32)
    b_tot = b_tot.astype(jnp.float32)
    for w, b in params[1:]:
        w_tot = jnp.dot(w_tot, w, preferred_element_type=jnp.float32)
        b_tot = jnp.dot(b_tot, w, preferred_element_type=jnp.float32) + b
    return w_tot, b_tot


def _round_up(x, m):
    return (x + m - 1) // m * m


def _pick_batch_tile(B, per_row_bytes, *, max_tile=2048, row_budget_bytes=8 << 20):
    """Largest sane batch tile: big enough to amortize grid-step overhead,
    small enough to fit the VMEM row budget and leave >= 4 grid steps
    (so both v7x TensorCores get >= 2 steps each to pipeline)."""
    tile = min(max_tile, max(row_budget_bytes // max(per_row_bytes, 1), _SUBLANE))
    tile = min(tile, max(_round_up(pl.cdiv(B, 4), _SUBLANE), _SUBLANE))
    return max(_SUBLANE, (tile // _SUBLANE) * _SUBLANE)


def _vmem_limit(need_bytes, *, floor=32 << 20, ceil=64 << 20):
    """2x headroom over the estimated footprint, clamped to a portable range
    (v7x physical VMEM is 64 MiB)."""
    # TODO(synk): for weight stacks whose footprint alone exceeds ~48 MiB the
    # layer stack would need to be split / dout-tiled; not needed at these sizes.
    return int(min(max(2 * need_bytes, floor), ceil))


# ----------------------------- forward --------------------------------------


def to_hidden_forward(x, params, *, collapse=True, batch_tile=None,
                      no_grid_max_batch=512):
    """Fused ToHidden forward: x -> Linear_0 -> ... -> Linear_{L-1}.

    x:       (B, Din) float32
    params:  list of (w, b) with w: (din, dout), b: (1, dout)
    """
    B, Din = x.shape
    n_layers = len(params)
    assert n_layers >= 1
    assert params[0][0].shape[0] == Din, (params[0][0].shape, Din)
    Dout = params[-1][0].shape[1]
    itemsize = jnp.dtype(jnp.float32).itemsize

    if collapse:
        # No nonlinearity between layers => whole stack is one affine map.
        w_tot, b_tot = _collapse_affine(params)
        kernel = _affine_kernel
        flat_params = [w_tot, b_tot]
        weight_shapes = [(Din, Dout)]
        widest_hidden = Dout
    else:
        kernel = _make_chain_kernel(n_layers)
        flat_params = []
        for w, b in params:
            assert b.shape == (1, w.shape[1]), (w.shape, b.shape)
            flat_params.extend((w, b))
        weight_shapes = [w.shape for w, _ in params]
        widest_hidden = max(w.shape[1] for w, _ in params)

    weight_bytes = sum((a * b + b) * itemsize for a, b in weight_shapes)
    flops = 2 * B * sum(a * b for a, b in weight_shapes)
    bytes_accessed = (B * Din + B * Dout) * itemsize + weight_bytes
    cost = pl.CostEstimate(flops=flops, transcendentals=0,
                           bytes_accessed=bytes_accessed)

    if B <= no_grid_max_batch:
        # Small batch: single block, no grid, everything resident in VMEM
        # (no grid=(1,) pipeline scaffolding / double-buffer overhead).
        vmem_need = (B * (Din + Dout + widest_hidden)) * itemsize + weight_bytes
        vmem = pl.BlockSpec(memory_space=pltpu.MemorySpace.VMEM)
        return pl.pallas_call(
            kernel,
            out_shape=jax.ShapeDtypeStruct((B, Dout), x.dtype),
            in_specs=[vmem] * (1 + len(flat_params)),
            out_specs=vmem,
            cost_estimate=cost,
            compiler_params=pltpu.CompilerParams(
                vmem_limit_bytes=_vmem_limit(vmem_need)),
        )(x, *flat_params)

    # Large batch: tile only the batch axis; weights/biases have constant
    # index_maps so they stay VMEM-resident across the whole grid.  Batch
    # axis is "parallel" so a v7x megacore can split it across TensorCores.
    per_row_bytes = (2 * Din + 2 * Dout + widest_hidden) * itemsize
    if batch_tile is None:
        batch_tile = _pick_batch_tile(B, per_row_bytes)
    batch_tile = max(_SUBLANE, (batch_tile // _SUBLANE) * _SUBLANE)

    pad = (-B) % batch_tile
    x_in = jnp.pad(x, ((0, pad), (0, 0))) if pad else x
    Bp = B + pad

    in_specs = [pl.BlockSpec((batch_tile, Din), lambda i: (i, 0))]
    for p in flat_params:
        r, c = p.shape
        in_specs.append(pl.BlockSpec((r, c), lambda i: (0, 0)))
    out_specs = pl.BlockSpec((batch_tile, Dout), lambda i: (i, 0))

    vmem_need = batch_tile * per_row_bytes + 2 * weight_bytes
    out = pl.pallas_call(
        kernel,
        out_shape=jax.ShapeDtypeStruct((Bp, Dout), x.dtype),
        grid=(Bp // batch_tile,),
        in_specs=in_specs,
        out_specs=out_specs,
        cost_estimate=cost,
        compiler_params=pltpu.CompilerParams(
            dimension_semantics=("parallel",),
            vmem_limit_bytes=_vmem_limit(vmem_need)),
    )(x_in, *flat_params)
    return out[:B] if pad else out


# ----------------------------- params / reference ---------------------------


def init_to_hidden_params(key, fc_sizes):
    """Deterministic parameter init mimicking nn.Linear's default
    (uniform in [-1/sqrt(fan_in), 1/sqrt(fan_in)])."""
    params = []
    for i in range(len(fc_sizes) - 1):
        din, dout = fc_sizes[i], fc_sizes[i + 1]
        key, kw, kb = jax.random.split(key, 3)
        bound = 1.0 / math.sqrt(din)
        w = jax.random.uniform(kw, (din, dout), jnp.float32, -bound, bound)
        b = jax.random.uniform(kb, (1, dout), jnp.float32, -bound, bound)
        params.append((w, b))
    return params


def _reference(x, params):
    y = x
    for w, b in params:
        y = y @ w + b
    return y


if __name__ == "__main__":
    # Synthetic config: to_hidden_fc_sizes = [32, 64, 16] -> two Linear layers,
    # applied sequentially with NO activation in between.
    fc_sizes = [32, 64, 16]

    key = jax.random.PRNGKey(0)
    key, kx_small, kx_big = jax.random.split(key, 3)
    params = init_to_hidden_params(key, fc_sizes)

    # --- small-batch path (no grid, collapsed stack -> single GEMM) ---
    batch = 8
    x_small = jax.random.normal(kx_small, (batch, fc_sizes[0]), jnp.float32)
    y_small = jax.block_until_ready(to_hidden_forward(x_small, params))
    ref_small = _reference(x_small, params)
    assert y_small.shape == (batch, fc_sizes[-1])
    assert jnp.allclose(y_small, ref_small, atol=1e-4, rtol=1e-4)

    # --- layer-by-layer fallback path (exact PyTorch loop rounding) ---
    y_exact = jax.block_until_ready(
        to_hidden_forward(x_small, params, collapse=False))
    assert jnp.allclose(y_exact, ref_small, atol=1e-5, rtol=1e-5)

    # --- large ragged batch (batch-tiled grid, padded tail, parallel axis) ---
    big_batch = 1000  # not a multiple of the tile -> exercises pad/slice path
    x_big = jax.random.normal(kx_big, (big_batch, fc_sizes[0]), jnp.float32)
    y_big = jax.block_until_ready(to_hidden_forward(x_big, params))
    assert y_big.shape == (big_batch, fc_sizes[-1])
    assert jnp.allclose(y_big, _reference(x_big, params), atol=1e-4, rtol=1e-4)

    print("KERNEL_OK")
</pallas_src>

<mosaic_0001>
module attributes {stable_mosaic.version = 11 : i64} {
  func.func @_affine_kernel(%arg0: memref<8x32xf32, #tpu.memory_space<vmem>>, %arg1: memref<32x16xf32, #tpu.memory_space<vmem>>, %arg2: memref<1x16xf32, #tpu.memory_space<vmem>>, %arg3: memref<8x16xf32, #tpu.memory_space<vmem>>) attributes {dimension_semantics = [], scalar_prefetch = 0 : i64, scratch_operands = 0 : i64, tpu.core_type = #tpu.core_type<tc>} {
    %c0 = arith.constant 0 : index
    %c0_0 = arith.constant 0 : index
    %0 = vector.load %arg0[%c0, %c0_0] : memref<8x32xf32, #tpu.memory_space<vmem>>, vector<8x32xf32>
    %c0_1 = arith.constant 0 : index
    %c0_2 = arith.constant 0 : index
    %1 = vector.load %arg1[%c0_1, %c0_2] : memref<32x16xf32, #tpu.memory_space<vmem>>, vector<32x16xf32>
    %cst = arith.constant dense<0.000000e+00> : vector<8x16xf32>
    %2 = tpu.matmul %0, %1, %cst {dimension_numbers = #tpu.dot_dimension_numbers<[1], [0], [0], [1], [0, 0, 1, 1], [], []>} : vector<8x32xf32>, vector<32x16xf32>, vector<8x16xf32> -> vector<8x16xf32>
    %c0_3 = arith.constant 0 : index
    %c0_4 = arith.constant 0 : index
    %3 = vector.load %arg2[%c0_3, %c0_4] : memref<1x16xf32, #tpu.memory_space<vmem>>, vector<1x16xf32>
    %4 = vector.broadcast %3 : vector<1x16xf32> to vector<8x16xf32>
    %5 = arith.addf %2, %4 : vector<8x16xf32>
    %c0_5 = arith.constant 0 : index
    %c0_6 = arith.constant 0 : index
    %6 = vector.load %arg3[%c0_5, %c0_6] : memref<8x16xf32, #tpu.memory_space<vmem>>, vector<8x16xf32>
    tpu.vector_store %arg3[%c0_5, %c0_6], %5 {strides = array<i32>} : memref<8x16xf32, #tpu.memory_space<vmem>>, vector<8x16xf32>,
    return
  }
}

</mosaic_0001>

<llo_original>
// kernel: tpu_custom_call.1
$region0: #{tpu_custom_call.1}
  #allocation0 [shape = 'u32[]', space=smem, size = 0x4, offset = 0x4, fixed_abs, tag = 'smem constant byte address 0x4 - core index']
  #allocation1 [shape = 'u32[144,128]{1,0:T(1,128)}', space=vmem, size = 0x12000, scoped, tag = 'internal scratch']
  %s0 = inlined_call_operand.vmem [shape: f32[8,32], index: 0, kind: input, shape index: {}]
  %s1 = inlined_call_operand.vmem [shape: f32[32,16], index: 1, kind: input, shape index: {}]
  %s2 = inlined_call_operand.vmem [shape: f32[1,16], index: 2, kind: input, shape index: {}]
  %s3 = inlined_call_operand.hbm [shape: f32[8,16], index: 3, kind: output, shape index: {}]
  %s4 = sld [smem:[#allocation0]]
  $region22: #{tpu_custom_call.1} parent=0
    _
  %s6 = ssub.s32 1, %s4
  %s7 = scalar_select 0, %s6, %s4
  $region1: #{tpu_custom_call.1} parent=0
    #allocation2 [shape = 'u8[4096]{0}', space=vmem, size = 0x1000, scoped, tag = 'output window, operand 0, single buffered']
    #allocation3 [shape = 's32[1]{0}', space=sflag, size = 0x4, scoped, tag = 'scoped memory for tpu_custom_call.1']
    %8 = vsyncpa [#allocation3], 0
    // Predicated region
    $region2: #{tpu_custom_call.1} parent=1 // pred_check
      _
    $region3: #{tpu_custom_call.1} parent=1 // pred_check_branch
      %10 = sbr.rel (0) target = $region5
    $region4: #{tpu_custom_call.1} parent=1 // pred_region
      _
    $region5: #{tpu_custom_call.1} parent=1 // pred_fallthru
      _
    // Predicated region
    $region6: #{tpu_custom_call.1} parent=1 // pred_check
      _
    $region7: #{tpu_custom_call.1} parent=1 // pred_check_branch
      %12 = sbr.rel (0) target = $region9
    $region8: #{tpu_custom_call.1} parent=1 // pred_region
      _
    $region9: #{tpu_custom_call.1} parent=1 // pred_fallthru
      _
    // Predicated region
    $region10: #{tpu_custom_call.1} parent=1 // pred_check
      _
    $region11: #{tpu_custom_call.1} parent=1 // pred_check_branch
      %14 = sbr.rel (0) target = $region13
    $region12: #{tpu_custom_call.1} parent=1 // pred_region
      _
    $region13: #{tpu_custom_call.1} parent=1 // pred_fallthru
      _
    %v15 = vld [vmem:[%s0] sm:$0xff]
    %v16 = vld [vmem:[%s1] sm:$0xff]
    %v17 = vld [vmem:[%s1 + $0x8] sm:$0xff]
    %v18 = vld [vmem:[%s1 + $0x10] sm:$0xff]
    %v19 = vld [vmem:[%s1 + $0x18] sm:$0xff]
    %v20 = vld [vmem:[%s2] sm:$0x1]
    %v22 = vlaneseq
    %v23 = vshrl.u32 %v22, 7
    %v24 = vsub.s32 0, %v23
    %v25 = vrot.slane %v20, %v24
    %vm27 = vcmask 261120
    %v29 = vsel %vm27, %v15, 0
    %31 = vmatprep.subr.mxu0 0.0
    %32 = vmatpush1.msra.mxu0 %v16
    %33 = vmatprep.subr.mxu0 0.0
    %34 = vmatpush1.msra.mxu0 %v17
    %35 = vmatprep.subr.mxu0 0.0
    %36 = vmatpush1.msra.mxu0 %v18
    %37 = vmatprep.subr.mxu0 0.0
    %38 = vmatpush1.msra.mxu0 %v19
    %39 = vmatprep.subr.mxu0 0.0
    %40 = vmatpush1.msra.mxu0 0.0
    %41 = vmatprep.subr.mxu0 0.0
    %42 = vmatpush1.msra.mxu0 0.0
    %43 = vmatprep.subr.mxu0 0.0
    %44 = vmatpush1.msra.mxu0 0.0
    %45 = vmatprep.subr.mxu0 0.0
    %46 = vmatpush1.msra.mxu0 0.0
    %47 = vmatprep.subr.mxu0 0.0
    %48 = vmatpush1.msra.mxu0 0.0
    %49 = vmatprep.subr.mxu0 0.0
    %50 = vmatpush1.msra.mxu0 0.0
    %51 = vmatprep.subr.mxu0 0.0
    %52 = vmatpush1.msra.mxu0 0.0
    %53 = vmatprep.subr.mxu0 0.0
    %54 = vmatpush1.msra.mxu0 0.0
    %55 = vmatprep.subr.mxu0 0.0
    %56 = vmatpush1.msra.mxu0 0.0
    %57 = vmatprep.subr.mxu0 0.0
    %58 = vmatpush1.msra.mxu0 0.0
    %59 = vmatprep.subr.mxu0 0.0
    %60 = vmatpush1.msra.mxu0 0.0
    %61 = vmatprep.subr.mxu0 0.0
    %62 = vmatpush1.msra.mxu0 0.0
    %63 = vmatprep.subr.mxu0 0.0
    %64 = vmatpush1.msra.mxu0 0.0
    %65 = vmatprep.subr.mxu0 0.0
    %66 = vmatpush1.msra.mxu0 0.0
    %67 = vmatprep.subr.mxu0 0.0
    %68 = vmatpush1.msra.mxu0 0.0
    %69 = vmatprep.subr.mxu0 0.0
    %70 = vmatpush1.msra.mxu0 0.0
    %71 = vmatprep.subr.mxu0 0.0
    %72 = vmatpush1.msra.mxu0 0.0
    %73 = vmatprep.subr.mxu0 0.0
    %74 = vmatpush1.msra.mxu0 0.0
    %75 = vmatprep.subr.mxu0 0.0
    %76 = vmatpush1.msra.mxu0 0.0
    %77 = vmatprep.subr.mxu0 0.0
    %78 = vmatpush1.msra.mxu0 0.0
    %79 = vmatprep.subr.mxu0 0.0
    %80 = vmatpush1.msra.mxu0 0.0
    %81 = vmatprep.subr.mxu0 0.0
    %82 = vmatpush1.msra.mxu0 0.0
    %83 = vmatprep.subr.mxu0 0.0
    %84 = vmatpush1.msra.mxu0 0.0
    %85 = vmatprep.subr.mxu0 0.0
    %86 = vmatpush1.msra.mxu0 0.0
    %87 = vmatprep.subr.mxu0 0.0
    %88 = vmatpush1.msra.mxu0 0.0
    %89 = vmatprep.subr.mxu0 0.0
    %90 = vmatpush1.msra.mxu0 0.0
    %91 = vmatprep.subr.mxu0 0.0
    %92 = vmatpush1.msra.mxu0 0.0
    %93 = vmatprep.subr.mxu0 0.0
    %94 = vmatpush1.msra.mxu0 0.0
    %95 = vmatprep.mubr.f32.mxu0 0.0
    %96 = vmatmul.mubr.f32.gmra.mrb[0].mxu0 %v29
    %v97 = vpop.f32.mrb[0].mxu0
    %v98 = vadd.f32 %v25, %v97
    %v99 = vpop.f32.mrb[0].mxu0
    %100 = vdwg.mxu0
    %vm101 = vcmask 130048
    %102 = vst.msk [vmem:[#allocation2] sm:$0xff] %vm101, %v98
    // Predicated region
    $region14: #{tpu_custom_call.1} parent=1 // pred_check
      _
    $region15: #{tpu_custom_call.1} parent=1 // pred_check_branch
      %104 = sbr.rel (0) target = $region17
    $region16: #{tpu_custom_call.1} parent=1 // pred_region
      %s106 = ssub.s32 128, 128
      %107 = vsyncadd [#allocation3], %s106
      %s109 = sshll.u32 [#allocation2], 4
      %s110 = int_to_ptr.vmem [resolvable:$true] %s109
      %112 = dma.vmem_to_hbm [thread:$0]  %s110, 128, %s3, [#allocation3]
    $region17: #{tpu_custom_call.1} parent=1 // pred_fallthru
      _
    // Predicated region
    $region18: #{tpu_custom_call.1} parent=1 // pred_check
      _
    $region19: #{tpu_custom_call.1} parent=1 // pred_check_branch
      %114 = sbr.rel (0) target = $region21
    $region20: #{tpu_custom_call.1} parent=1 // pred_region
      %115 = dma.done [#allocation3], 128
    $region21: #{tpu_custom_call.1} parent=1 // pred_fallthru
      _
    %116 = vsyncpa [#allocation3], 1

</llo_original>
